<compile_context>
chip_gen: v7x
topology: tpu7x:2x2x1
jax: 0.10.0
libtpu: 0.0.40
codegen_flags: <defaults>
</compile_context>

<pallas_src>
import functools

import jax
import jax.numpy as jnp
import numpy as np
from jax import lax
from jax.experimental import pallas as pl
from jax.experimental.pallas import tpu as pltpu

_LOG_EPS = float(np.log(1e-7))   # torch clamps probs at 1e-7 before the log


def _multibox_kernel(num_classes, background_label_id, n_valid, need_tail_mask,
                     loc_pred_ref, cls_pred_ref, gt_ref,
                     cm_ref, pos_loc_ref, pos_conf_ref, num_pos_ref):
    t = pl.program_id(1)
    C = num_classes

    # Per-batch-row accumulators live in their resident output blocks; reset on
    # the first N tile of every batch row.
    @pl.when(t == 0)
    def _init():
        pos_loc_ref[...] = jnp.zeros_like(pos_loc_ref)
        pos_conf_ref[...] = jnp.zeros_like(pos_conf_ref)
        num_pos_ref[...] = jnp.zeros_like(num_pos_ref)

    loc_pred = loc_pred_ref[...].astype(jnp.float32)      # (1, 4, T)
    logits = cls_pred_ref[...].astype(jnp.float32)        # (1, C, T)
    gt = gt_ref[...].astype(jnp.float32)                  # (1, 4+C+1, T)
    gt_loc = gt[:, :4, :]                                 # (1, 4, T)
    gt_cls = gt[:, 4:4 + C, :]                            # (1, C, T)
    mask = gt[:, 4 + C:4 + C + 1, :]                      # (1, 1, T)

    # _softmax_loss: -sum(y_true * log(clamp(softmax(logits), 1e-7)), class).
    # log(max(p, eps)) == max(log_softmax, log(eps)) (log is monotone), so the
    # torch clamp is preserved exactly while issuing a single log per box.
    m = jnp.max(logits, axis=1, keepdims=True)             # (1, 1, T)
    shifted = logits - m
    e = jnp.exp(shifted)
    sum_e = jnp.sum(e, axis=1, keepdims=True)
    log_sum_e = jnp.log(sum_e)
    log_probs = jnp.maximum(shifted - log_sum_e, jnp.float32(_LOG_EPS))
    conf_loss = -jnp.sum(gt_cls * log_probs, axis=1, keepdims=True)   # (1,1,T)

    # _l1_smooth_loss over the 4 loc coordinates.
    diff = gt_loc - loc_pred
    abs_d = jnp.abs(diff)
    l1 = jnp.where(abs_d < 1.0, 0.5 * diff * diff, abs_d - 0.5)
    loc_loss = jnp.sum(l1, axis=1, keepdims=True)                     # (1,1,T)

    # max_confs = probability mass of classes [bg+1, bg+num_classes), i.e.
    # torch's y_pred[:, :, confs_start:confs_end]. Reuse e / sum_e (no extra
    # exp). Exact divide kept so negative-mining ranking stays bit-close to the
    # reference (pl.reciprocal(approx=True) would only widen rank ties).
    inv_sum_e = 1.0 / sum_e
    if background_label_id == 0:
        # Softmax sums to one, so the non-background mass is 1 - p_background.
        max_confs = 1.0 - e[:, :1, :] * inv_sum_e                     # (1,1,T)
    else:
        cls_idx = lax.broadcasted_iota(jnp.int32, logits.shape, 1)
        cs = background_label_id + 1
        ce = cs + num_classes - 1
        sel = jnp.logical_and(cls_idx >= cs, cls_idx < ce).astype(jnp.float32)
        max_confs = jnp.sum(e * sel, axis=1, keepdims=True) * inv_sum_e

    if need_tail_mask:
        # Ragged last tile: lanes >= n_valid contain unspecified DMA padding
        # (possibly NaN/Inf). Zero them with a select (not a multiply) so no
        # garbage leaks into the cross-lane sums or the negative-mining pool.
        T = logits.shape[-1]
        lane = t * T + lax.broadcasted_iota(jnp.int32, (1, 1, T), 2)
        valid = lane < n_valid
        conf_loss = jnp.where(valid, conf_loss, 0.0)
        loc_loss = jnp.where(valid, loc_loss, 0.0)
        max_confs = jnp.where(valid, max_confs, 0.0)
        mask = jnp.where(valid, mask, 0.0)

    # Fused streamed output: sublane 0 = conf loss / box, sublane 1 = masked
    # max_confs (negative-mining score).
    cm_ref[:, 0:1, :] = conf_loss
    cm_ref[:, 1:2, :] = max_confs * (1.0 - mask)

    pos_loc_ref[...] += jnp.sum(loc_loss * mask, axis=2, keepdims=True)
    pos_conf_ref[...] += jnp.sum(conf_loss * mask, axis=2, keepdims=True)
    num_pos_ref[...] += jnp.sum(mask, axis=2, keepdims=True)


def multibox_loss(y_pred_loc, y_pred_cls, y_gt, *, num_classes, alpha=1.0,
                  neg_pos_ratio=3.0, background_label_id=0,
                  negative_for_hard=100.0, n_tile=2048, row_split=None,
                  max_neg_k=None, vmem_limit_bytes=None):
    """Forward pass of the PyTorch MultiBoxLoss module.

    y_pred_loc : (B, N, 4)     loc predictions (f32 or bf16)   == y_pred[0]
    y_pred_cls : (B, N, C)     raw class logits (f32 or bf16)  == y_pred[1]
    y_gt       : (B, N, 4+C+1) [loc target | class target | positive mask]

    n_tile: boxes per grid step (multiple of 128, clipped to N per row). The
    per-step VMEM footprint is only ~(2C + D + 6) * 4 B per box (~0.3 KB/box at
    C=21), so even 4096-box tiles double-buffered use < 3 MiB — far under the
    scoped-VMEM default on v5e/v6e/v7x alike. Bigger tiles amortize the
    ~0.35 us fixed per-grid-step overhead; the default 2048 is a good start.
    row_split: split each batch row into pseudo-rows (default 2 when B == 1 so
    both v7x TensorCores are fed; 1 otherwise).
    max_neg_k: optional static upper bound on the number of mined negatives,
    shrinking the glue-side lax.top_k when domain knowledge bounds num_pos.
    """
    B, N, D = y_gt.shape
    C = num_classes
    assert D == 4 + C + 1
    assert y_pred_loc.shape == (B, N, 4)
    assert y_pred_cls.shape == (B, N, C)

    if row_split is None:
        row_split = 2 if (B == 1 and N % 2 == 0) else 1
    if N % row_split != 0:
        row_split = 1
    B_eff = B * row_split
    N_eff = N // row_split

    # Pseudo-row reshape (no data movement) + single layout pass per input
    # putting the box axis on lanes.
    loc_pred_t = jnp.transpose(y_pred_loc.reshape(B_eff, N_eff, 4), (0, 2, 1))
    cls_pred_t = jnp.transpose(y_pred_cls.reshape(B_eff, N_eff, C), (0, 2, 1))
    gt_t = jnp.transpose(y_gt.reshape(B_eff, N_eff, D), (0, 2, 1))

    n_tile = max(128, (int(n_tile) // 128) * 128)
    if n_tile >= N_eff:
        n_tile = N_eff            # full-extent block (allowed even if not %128)
        n_tiles = 1
    else:
        n_tiles = pl.cdiv(N_eff, n_tile)
    need_tail_mask = (N_eff % n_tile) != 0

    bmap = lambda b, t: (b, 0, t)   # streamed along N
    smap = lambda b, t: (b, 0, 0)   # per-batch accumulators (resident over t)

    cm, pos_loc, pos_conf, num_pos = pl.pallas_call(
        functools.partial(_multibox_kernel, C, background_label_id,
                          N_eff, need_tail_mask),
        out_shape=(
            jax.ShapeDtypeStruct((B_eff, 2, N_eff), jnp.float32),  # conf|maxc
            jax.ShapeDtypeStruct((B_eff, 1, 1), jnp.float32),      # pos_loc_loss
            jax.ShapeDtypeStruct((B_eff, 1, 1), jnp.float32),      # pos_conf_loss
            jax.ShapeDtypeStruct((B_eff, 1, 1), jnp.float32),      # num_pos
        ),
        grid=(B_eff, n_tiles),
        in_specs=[
            pl.BlockSpec((1, 4, n_tile), bmap),
            pl.BlockSpec((1, C, n_tile), bmap),
            pl.BlockSpec((1, D, n_tile), bmap),
        ],
        out_specs=(
            pl.BlockSpec((1, 2, n_tile), bmap),
            pl.BlockSpec((1, 1, 1), smap),
            pl.BlockSpec((1, 1, 1), smap),
            pl.BlockSpec((1, 1, 1), smap),
        ),
        compiler_params=pltpu.CompilerParams(
            dimension_semantics=("parallel", "arbitrary"),
            vmem_limit_bytes=vmem_limit_bytes),
    )(loc_pred_t, cls_pred_t, gt_t)

    # Collapse pseudo-rows back to real batch rows.
    num_pos_v = num_pos[:, 0, 0].reshape(B, row_split).sum(axis=1)
    pos_loc_v = pos_loc[:, 0, 0].reshape(B, row_split).sum(axis=1)
    pos_conf_v = pos_conf[:, 0, 0].reshape(B, row_split).sum(axis=1)
    conf_flat = cm[:, 0, :].reshape(-1)    # pseudo-rows are contiguous chunks
    maxc_flat = cm[:, 1, :].reshape(-1)

    num_neg = jnp.minimum(neg_pos_ratio * num_pos_v, N - num_pos_v)
    has_min = jnp.sum((num_neg > 0).astype(jnp.float32))
    num_neg_batch = jnp.where(has_min > 0, jnp.sum(num_neg),
                              jnp.float32(negative_for_hard))
    # torch: int(num_neg_batch) truncates toward zero (num_neg_batch >= 0).
    k = jnp.floor(num_neg_batch).astype(jnp.int32)

    # Data-dependent-k torch.topk emulated with a statically bounded lax.top_k
    # plus a rank mask.  Tie-breaking among equal max_confs may differ.
    if max_neg_k is None:
        k_max = int(min(B * N,
                        max(np.ceil(B * N * neg_pos_ratio / (neg_pos_ratio + 1.0)),
                            np.ceil(negative_for_hard))))
    else:
        k_max = int(max_neg_k)
    k_max = max(1, min(k_max, B * N))
    k = jnp.minimum(k, k_max)
    _, top_idx = lax.top_k(maxc_flat, k_max)
    sel_conf = conf_flat[top_idx]
    ranks = jnp.arange(k_max, dtype=jnp.int32)
    neg_conf_loss_sum = jnp.sum(jnp.where(ranks < k, sel_conf, 0.0))

    num_pos_fixed = jnp.where(num_pos_v != 0, num_pos_v,
                              jnp.ones_like(num_pos_v))
    total = (jnp.sum(pos_conf_v) + neg_conf_loss_sum
             + jnp.sum(alpha * pos_loc_v))
    return total / jnp.sum(num_pos_fixed)


def reference_loss(loc_pred, cls_logits, y_gt, num_classes, alpha=1.0,
                   neg_pos_ratio=3.0, background_label_id=0,
                   negative_for_hard=100.0):
    """Pure-JAX mirror of the PyTorch forward for validation."""
    B, N, _ = y_gt.shape
    probs = jax.nn.softmax(cls_logits, axis=-1)
    y_pred = jnp.concatenate([loc_pred, probs], axis=-1)
    conf_loss = -jnp.sum(
        y_gt[:, :, 4:-1] * jnp.log(jnp.maximum(y_pred[:, :, 4:], 1e-7)), axis=-1)
    diff = y_gt[:, :, :4] - y_pred[:, :, :4]
    abs_d = jnp.abs(diff)
    loc_loss = jnp.sum(jnp.where(abs_d < 1.0, 0.5 * diff * diff, abs_d - 0.5),
                       axis=-1)
    mask = y_gt[:, :, -1]
    pos_loc = jnp.sum(loc_loss * mask, axis=1)
    pos_conf = jnp.sum(conf_loss * mask, axis=1)
    num_pos = jnp.sum(mask, axis=-1)
    num_neg = jnp.minimum(neg_pos_ratio * num_pos, N - num_pos)
    has_min = jnp.sum((num_neg > 0).astype(jnp.float32))
    num_neg_batch = jnp.where(has_min > 0, jnp.sum(num_neg),
                              jnp.float32(negative_for_hard))
    cs = 4 + background_label_id + 1
    ce = cs + num_classes - 1
    max_confs = (jnp.sum(y_pred[:, :, cs:ce], axis=2) * (1.0 - mask)).reshape(-1)
    k = jnp.floor(num_neg_batch).astype(jnp.int32)
    order = jnp.argsort(-max_confs)
    sorted_conf = conf_loss.reshape(-1)[order]
    neg_sum = jnp.sum(jnp.where(jnp.arange(B * N) < k, sorted_conf, 0.0))
    num_pos_f = jnp.where(num_pos != 0, num_pos, jnp.ones_like(num_pos))
    return (jnp.sum(pos_conf) + neg_sum
            + jnp.sum(alpha * pos_loc)) / jnp.sum(num_pos_f)


if __name__ == "__main__":
    key = jax.random.PRNGKey(0)
    B, N, C = 2, 600, 21                    # batch, boxes, num_classes
    k1, k2, k3, k4, k5 = jax.random.split(key, 5)

    # bf16 predictions halve the HBM read traffic of the (memory-bound) kernel;
    # the kernel upcasts to f32 internally.
    y_pred_loc = jax.random.normal(k1, (B, N, 4), jnp.float32).astype(jnp.bfloat16)
    y_pred_cls = jax.random.normal(k2, (B, N, C), jnp.float32).astype(jnp.bfloat16)

    gt_loc = jax.random.normal(k3, (B, N, 4), jnp.float32)
    labels = jax.random.randint(k4, (B, N), 0, C)
    gt_cls = jax.nn.one_hot(labels, C, dtype=jnp.float32)
    pos_mask = (jax.random.uniform(k5, (B, N)) < 0.3).astype(jnp.float32)
    y_gt = jnp.concatenate([gt_loc, gt_cls, pos_mask[..., None]], axis=-1)

    ref = reference_loss(y_pred_loc.astype(jnp.float32),
                         y_pred_cls.astype(jnp.float32), y_gt, C)

    # 1) default tile: one grid step per batch row.
    loss_big = jax.block_until_ready(
        multibox_loss(y_pred_loc, y_pred_cls, y_gt, num_classes=C))
    assert np.allclose(np.asarray(loss_big), np.asarray(ref),
                       rtol=1e-4, atol=1e-4), (float(loss_big), float(ref))

    # 2) small tile: exercises multi-tile accumulation + ragged-tail masking
    #    (600 = 2*256 + 88).
    loss_tiled = jax.block_until_ready(
        multibox_loss(y_pred_loc, y_pred_cls, y_gt, num_classes=C, n_tile=256))
    assert np.allclose(np.asarray(loss_tiled), np.asarray(ref),
                       rtol=1e-4, atol=1e-4), (float(loss_tiled), float(ref))

    # 3) B == 1: exercises the pseudo-row split that keeps both v7x TCs busy.
    ref1 = reference_loss(y_pred_loc[:1].astype(jnp.float32),
                          y_pred_cls[:1].astype(jnp.float32), y_gt[:1], C)
    loss_b1 = jax.block_until_ready(
        multibox_loss(y_pred_loc[:1], y_pred_cls[:1], y_gt[:1], num_classes=C))
    assert np.allclose(np.asarray(loss_b1), np.asarray(ref1),
                       rtol=1e-4, atol=1e-4), (float(loss_b1), float(ref1))

    print("KERNEL_OK")
</pallas_src>

<mosaic_0001>
module attributes {stable_mosaic.version = 11 : i64} {
  func.func @_multibox_kernel(%arg0: i32, %arg1: i32, %arg2: memref<1x4x600xbf16, #tpu.memory_space<vmem>>, %arg3: memref<1x21x600xbf16, #tpu.memory_space<vmem>>, %arg4: memref<1x26x600xf32, #tpu.memory_space<vmem>>, %arg5: memref<1x2x600xf32, #tpu.memory_space<vmem>>, %arg6: memref<1x1x1xf32, #tpu.memory_space<vmem>>, %arg7: memref<1x1x1xf32, #tpu.memory_space<vmem>>, %arg8: memref<1x1x1xf32, #tpu.memory_space<vmem>>) attributes {dimension_semantics = [#tpu.dimension_semantics<parallel>, #tpu.dimension_semantics<arbitrary>], iteration_bounds = array<i64: 2, 1>, scalar_prefetch = 0 : i64, scratch_operands = 0 : i64, tpu.core_type = #tpu.core_type<tc>, window_params = [{transform_indices = @transform_0, window_bounds = array<i64: 1, 4, 600>}, {transform_indices = @transform_1, window_bounds = array<i64: 1, 21, 600>}, {transform_indices = @transform_2, window_bounds = array<i64: 1, 26, 600>}, {transform_indices = @transform_3, window_bounds = array<i64: 1, 2, 600>}, {transform_indices = @transform_4, window_bounds = array<i64: 1, 1, 1>}, {transform_indices = @transform_5, window_bounds = array<i64: 1, 1, 1>}, {transform_indices = @transform_6, window_bounds = array<i64: 1, 1, 1>}]} {
    %c0_i32 = arith.constant 0 : i32
    %0 = arith.cmpi eq, %arg1, %c0_i32 : i32
    %1 = arith.extui %0 : i1 to i32
    %c0_i32_0 = arith.constant 0 : i32
    %2 = arith.cmpi ne, %1, %c0_i32_0 : i32
    scf.if %2 {
      %cst_46 = arith.constant 0.000000e+00 : f32
      %68 = vector.broadcast %cst_46 : f32 to vector<1x1x1xf32>
      %c0_47 = arith.constant 0 : index
      %c0_48 = arith.constant 0 : index
      %c0_49 = arith.constant 0 : index
      %69 = vector.load %arg6[%c0_47, %c0_48, %c0_49] : memref<1x1x1xf32, #tpu.memory_space<vmem>>, vector<1x1x1xf32>
      tpu.vector_store %arg6[%c0_47, %c0_48, %c0_49], %68 {strides = array<i32>} : memref<1x1x1xf32, #tpu.memory_space<vmem>>, vector<1x1x1xf32>,
      %cst_50 = arith.constant 0.000000e+00 : f32
      %70 = vector.broadcast %cst_50 : f32 to vector<1x1x1xf32>
      %c0_51 = arith.constant 0 : index
      %c0_52 = arith.constant 0 : index
      %c0_53 = arith.constant 0 : index
      %71 = vector.load %arg7[%c0_51, %c0_52, %c0_53] : memref<1x1x1xf32, #tpu.memory_space<vmem>>, vector<1x1x1xf32>
      tpu.vector_store %arg7[%c0_51, %c0_52, %c0_53], %70 {strides = array<i32>} : memref<1x1x1xf32, #tpu.memory_space<vmem>>, vector<1x1x1xf32>,
      %cst_54 = arith.constant 0.000000e+00 : f32
      %72 = vector.broadcast %cst_54 : f32 to vector<1x1x1xf32>
      %c0_55 = arith.constant 0 : index
      %c0_56 = arith.constant 0 : index
      %c0_57 = arith.constant 0 : index
      %73 = vector.load %arg8[%c0_55, %c0_56, %c0_57] : memref<1x1x1xf32, #tpu.memory_space<vmem>>, vector<1x1x1xf32>
      tpu.vector_store %arg8[%c0_55, %c0_56, %c0_57], %72 {strides = array<i32>} : memref<1x1x1xf32, #tpu.memory_space<vmem>>, vector<1x1x1xf32>,
    } else {
    }
    %c0 = arith.constant 0 : index
    %c0_1 = arith.constant 0 : index
    %c0_2 = arith.constant 0 : index
    %3 = vector.load %arg2[%c0, %c0_1, %c0_2] : memref<1x4x600xbf16, #tpu.memory_space<vmem>>, vector<1x4x600xbf16>
    %4 = arith.extf %3 : vector<1x4x600xbf16> to vector<1x4x600xf32>
    %c0_3 = arith.constant 0 : index
    %c0_4 = arith.constant 0 : index
    %c0_5 = arith.constant 0 : index
    %5 = vector.load %arg3[%c0_3, %c0_4, %c0_5] : memref<1x21x600xbf16, #tpu.memory_space<vmem>>, vector<1x21x600xbf16>
    %6 = arith.extf %5 : vector<1x21x600xbf16> to vector<1x21x600xf32>
    %c0_6 = arith.constant 0 : index
    %c0_7 = arith.constant 0 : index
    %c0_8 = arith.constant 0 : index
    %7 = vector.load %arg4[%c0_6, %c0_7, %c0_8] : memref<1x26x600xf32, #tpu.memory_space<vmem>>, vector<1x26x600xf32>
    %8 = vector.extract_strided_slice %7 {offsets = [0, 0, 0], sizes = [1, 4, 600], strides = [1, 1, 1]} : vector<1x26x600xf32> to vector<1x4x600xf32>
    %9 = vector.extract_strided_slice %7 {offsets = [0, 4, 0], sizes = [1, 21, 600], strides = [1, 1, 1]} : vector<1x26x600xf32> to vector<1x21x600xf32>
    %10 = vector.extract_strided_slice %7 {offsets = [0, 25, 0], sizes = [1, 1, 600], strides = [1, 1, 1]} : vector<1x26x600xf32> to vector<1x1x600xf32>
    %cst = arith.constant dense<0xFF800000> : vector<1x600xf32>
    %11 = vector.multi_reduction <maximumf>, %6, %cst [1] : vector<1x21x600xf32> to vector<1x600xf32>
    %12 = vector.shape_cast %11 : vector<1x600xf32> to vector<1x1x600xf32>
    %13 = vector.broadcast %12 : vector<1x1x600xf32> to vector<1x21x600xf32>
    %14 = arith.subf %6, %13 : vector<1x21x600xf32>
    %15 = math.exp %14 : vector<1x21x600xf32>
    %cst_9 = arith.constant dense<0.000000e+00> : vector<1x600xf32>
    %16 = vector.multi_reduction <add>, %15, %cst_9 [1] : vector<1x21x600xf32> to vector<1x600xf32>
    %17 = vector.shape_cast %16 : vector<1x600xf32> to vector<1x1x600xf32>
    %18 = math.log %17 : vector<1x1x600xf32>
    %19 = vector.broadcast %18 : vector<1x1x600xf32> to vector<1x21x600xf32>
    %20 = arith.subf %14, %19 : vector<1x21x600xf32>
    %cst_10 = arith.constant -16.1180954 : f32
    %21 = vector.broadcast %cst_10 : f32 to vector<1x21x600xf32>
    %22 = arith.maximumf %20, %21 : vector<1x21x600xf32>
    %23 = arith.mulf %9, %22 : vector<1x21x600xf32>
    %cst_11 = arith.constant dense<0.000000e+00> : vector<1x600xf32>
    %24 = vector.multi_reduction <add>, %23, %cst_11 [1] : vector<1x21x600xf32> to vector<1x600xf32>
    %25 = vector.shape_cast %24 : vector<1x600xf32> to vector<1x1x600xf32>
    %cst_12 = arith.constant 0.000000e+00 : f32
    %26 = vector.broadcast %cst_12 : f32 to vector<1x1x600xf32>
    %27 = arith.subf %26, %25 : vector<1x1x600xf32>
    %28 = arith.subf %8, %4 : vector<1x4x600xf32>
    %29 = math.absf %28 : vector<1x4x600xf32>
    %cst_13 = arith.constant 1.000000e+00 : f32
    %30 = vector.broadcast %cst_13 : f32 to vector<1x4x600xf32>
    %31 = arith.cmpf olt, %29, %30 : vector<1x4x600xf32>
    %cst_14 = arith.constant 5.000000e-01 : f32
    %32 = vector.broadcast %cst_14 : f32 to vector<1x4x600xf32>
    %33 = arith.mulf %32, %28 : vector<1x4x600xf32>
    %34 = arith.mulf %33, %28 : vector<1x4x600xf32>
    %cst_15 = arith.constant 5.000000e-01 : f32
    %35 = vector.broadcast %cst_15 : f32 to vector<1x4x600xf32>
    %36 = arith.subf %29, %35 : vector<1x4x600xf32>
    %37 = arith.select %31, %34, %36 : vector<1x4x600xi1>, vector<1x4x600xf32>
    %cst_16 = arith.constant dense<0.000000e+00> : vector<1x600xf32>
    %38 = vector.multi_reduction <add>, %37, %cst_16 [1] : vector<1x4x600xf32> to vector<1x600xf32>
    %39 = vector.shape_cast %38 : vector<1x600xf32> to vector<1x1x600xf32>
    %cst_17 = arith.constant 1.000000e+00 : f32
    %40 = vector.broadcast %cst_17 : f32 to vector<1x1x600xf32>
    %41 = arith.divf %40, %17 : vector<1x1x600xf32>
    %42 = vector.extract_strided_slice %15 {offsets = [0, 0, 0], sizes = [1, 1, 600], strides = [1, 1, 1]} : vector<1x21x600xf32> to vector<1x1x600xf32>
    %43 = arith.mulf %42, %41 : vector<1x1x600xf32>
    %cst_18 = arith.constant 1.000000e+00 : f32
    %44 = vector.broadcast %cst_18 : f32 to vector<1x1x600xf32>
    %45 = arith.subf %44, %43 : vector<1x1x600xf32>
    %c0_19 = arith.constant 0 : index
    %c0_20 = arith.constant 0 : index
    %c0_21 = arith.constant 0 : index
    %46 = vector.load %arg5[%c0_19, %c0_20, %c0_21] : memref<1x2x600xf32, #tpu.memory_space<vmem>>, vector<1x1x600xf32>
    tpu.vector_store %arg5[%c0_19, %c0_20, %c0_21], %27 {strides = array<i32>} : memref<1x2x600xf32, #tpu.memory_space<vmem>>, vector<1x1x600xf32>,
    %cst_22 = arith.constant 1.000000e+00 : f32
    %47 = vector.broadcast %cst_22 : f32 to vector<1x1x600xf32>
    %48 = arith.subf %47, %10 : vector<1x1x600xf32>
    %49 = arith.mulf %45, %48 : vector<1x1x600xf32>
    %c0_23 = arith.constant 0 : index
    %c1 = arith.constant 1 : index
    %c0_24 = arith.constant 0 : index
    %50 = vector.load %arg5[%c0_23, %c1, %c0_24] : memref<1x2x600xf32, #tpu.memory_space<vmem>>, vector<1x1x600xf32>
    tpu.vector_store %arg5[%c0_23, %c1, %c0_24], %49 {strides = array<i32>} : memref<1x2x600xf32, #tpu.memory_space<vmem>>, vector<1x1x600xf32>,
    %c0_25 = arith.constant 0 : index
    %c0_26 = arith.constant 0 : index
    %c0_27 = arith.constant 0 : index
    %51 = vector.load %arg6[%c0_25, %c0_26, %c0_27] : memref<1x1x1xf32, #tpu.memory_space<vmem>>, vector<1x1x1xf32>
    %52 = arith.mulf %39, %10 : vector<1x1x600xf32>
    %cst_28 = arith.constant dense<0.000000e+00> : vector<1x1xf32>
    %53 = vector.multi_reduction <add>, %52, %cst_28 [2] : vector<1x1x600xf32> to vector<1x1xf32>
    %54 = vector.shape_cast %53 : vector<1x1xf32> to vector<1x1x1xf32>
    %55 = arith.addf %51, %54 : vector<1x1x1xf32>
    %c0_29 = arith.constant 0 : index
    %c0_30 = arith.constant 0 : index
    %c0_31 = arith.constant 0 : index
    %56 = vector.load %arg6[%c0_29, %c0_30, %c0_31] : memref<1x1x1xf32, #tpu.memory_space<vmem>>, vector<1x1x1xf32>
    tpu.vector_store %arg6[%c0_29, %c0_30, %c0_31], %55 {strides = array<i32>} : memref<1x1x1xf32, #tpu.memory_space<vmem>>, vector<1x1x1xf32>,
    %c0_32 = arith.constant 0 : index
    %c0_33 = arith.constant 0 : index
    %c0_34 = arith.constant 0 : index
    %57 = vector.load %arg7[%c0_32, %c0_33, %c0_34] : memref<1x1x1xf32, #tpu.memory_space<vmem>>, vector<1x1x1xf32>
    %58 = arith.mulf %27, %10 : vector<1x1x600xf32>
    %cst_35 = arith.constant dense<0.000000e+00> : vector<1x1xf32>
    %59 = vector.multi_reduction <add>, %58, %cst_35 [2] : vector<1x1x600xf32> to vector<1x1xf32>
    %60 = vector.shape_cast %59 : vector<1x1xf32> to vector<1x1x1xf32>
    %61 = arith.addf %57, %60 : vector<1x1x1xf32>
    %c0_36 = arith.constant 0 : index
    %c0_37 = arith.constant 0 : index
    %c0_38 = arith.constant 0 : index
    %62 = vector.load %arg7[%c0_36, %c0_37, %c0_38] : memref<1x1x1xf32, #tpu.memory_space<vmem>>, vector<1x1x1xf32>
    tpu.vector_store %arg7[%c0_36, %c0_37, %c0_38], %61 {strides = array<i32>} : memref<1x1x1xf32, #tpu.memory_space<vmem>>, vector<1x1x1xf32>,
    %c0_39 = arith.constant 0 : index
    %c0_40 = arith.constant 0 : index
    %c0_41 = arith.constant 0 : index
    %63 = vector.load %arg8[%c0_39, %c0_40, %c0_41] : memref<1x1x1xf32, #tpu.memory_space<vmem>>, vector<1x1x1xf32>
    %cst_42 = arith.constant dense<0.000000e+00> : vector<1x1xf32>
    %64 = vector.multi_reduction <add>, %10, %cst_42 [2] : vector<1x1x600xf32> to vector<1x1xf32>
    %65 = vector.shape_cast %64 : vector<1x1xf32> to vector<1x1x1xf32>
    %66 = arith.addf %63, %65 : vector<1x1x1xf32>
    %c0_43 = arith.constant 0 : index
    %c0_44 = arith.constant 0 : index
    %c0_45 = arith.constant 0 : index
    %67 = vector.load %arg8[%c0_43, %c0_44, %c0_45] : memref<1x1x1xf32, #tpu.memory_space<vmem>>, vector<1x1x1xf32>
    tpu.vector_store %arg8[%c0_43, %c0_44, %c0_45], %66 {strides = array<i32>} : memref<1x1x1xf32, #tpu.memory_space<vmem>>, vector<1x1x1xf32>,
    return
  }
  func.func @transform_0(%arg0: i32, %arg1: i32) -> (i32, i32, i32) {
    %c0_i32 = arith.constant 0 : i32
    %c0_i32_0 = arith.constant 0 : i32
    return %arg0, %c0_i32, %arg1 : i32, i32, i32
  }
  func.func @transform_1(%arg0: i32, %arg1: i32) -> (i32, i32, i32) {
    %c0_i32 = arith.constant 0 : i32
    %c0_i32_0 = arith.constant 0 : i32
    return %arg0, %c0_i32, %arg1 : i32, i32, i32
  }
  func.func @transform_2(%arg0: i32, %arg1: i32) -> (i32, i32, i32) {
    %c0_i32 = arith.constant 0 : i32
    %c0_i32_0 = arith.constant 0 : i32
    return %arg0, %c0_i32, %arg1 : i32, i32, i32
  }
  func.func @transform_3(%arg0: i32, %arg1: i32) -> (i32, i32, i32) {
    %c0_i32 = arith.constant 0 : i32
    %c0_i32_0 = arith.constant 0 : i32
    return %arg0, %c0_i32, %arg1 : i32, i32, i32
  }
  func.func @transform_4(%arg0: i32, %arg1: i32) -> (i32, i32, i32) {
    %c0_i32 = arith.constant 0 : i32
    %c0_i32_0 = arith.constant 0 : i32
    %c0_i32_1 = arith.constant 0 : i32
    return %arg0, %c0_i32, %c0_i32_0 : i32, i32, i32
  }
  func.func @transform_5(%arg0: i32, %arg1: i32) -> (i32, i32, i32) {
    %c0_i32 = arith.constant 0 : i32
    %c0_i32_0 = arith.constant 0 : i32
    %c0_i32_1 = arith.constant 0 : i32
    return %arg0, %c0_i32, %c0_i32_0 : i32, i32, i32
  }
  func.func @transform_6(%arg0: i32, %arg1: i32) -> (i32, i32, i32) {
    %c0_i32 = arith.constant 0 : i32
    %c0_i32_0 = arith.constant 0 : i32
    %c0_i32_1 = arith.constant 0 : i32
    return %arg0, %c0_i32, %c0_i32_0 : i32, i32, i32
  }
}

</mosaic_0001>

<llo_original>
// kernel: tpu_custom_call.1
$region0: #{tpu_custom_call.1}
  #allocation0 [shape = 'u32[]', space=smem, size = 0x4, offset = 0x4, fixed_abs, tag = 'smem constant byte address 0x4 - core index']
  #allocation1 [shape = 'u32[144,128]{1,0:T(1,128)}', space=vmem, size = 0x12000, scoped, tag = 'internal scratch']
  %s0 = inlined_call_operand.vmem [shape: bf16[2,4,600], index: 0, kind: input, shape index: {}]
  %s1 = inlined_call_operand.vmem [shape: bf16[2,21,600], index: 1, kind: input, shape index: {}]
  %s2 = inlined_call_operand.vmem [shape: f32[2,26,600], index: 2, kind: input, shape index: {}]
  %s3 = inlined_call_operand.hbm [shape: f32[2,2,600], index: 3, kind: output, shape index: {0}]
  %s4 = inlined_call_operand.vmem [shape: f32[2,1,1], index: 4, kind: output, shape index: {1}]
  %s5 = inlined_call_operand.vmem [shape: f32[2,1,1], index: 5, kind: output, shape index: {2}]
  %s6 = inlined_call_operand.vmem [shape: f32[2,1,1], index: 6, kind: output, shape index: {3}]
  %7 = xla_tuple %s3, %s4, %s5, %s6
  %s8 = sld [smem:[#allocation0]]
  $region73: #{tpu_custom_call.1} parent=0
    _
  %s10 = ssub.s32 1, %s8
  %s11 = scalar_select 0, %s10, %s8
  $region1: #{tpu_custom_call.1} parent=0
    #allocation2 [shape = 'u8[10240]{0}', space=vmem, size = 0x2800, scoped, tag = 'output window, operand 0']
    #allocation3 [shape = 's32[2]{0}', space=sflag, size = 0x8, scoped, tag = 'scoped memory for tpu_custom_call.1']
    %12 = vsyncpa [#allocation3], 0
    %s13 = scalar_lea.sflag [#allocation3], 1
    %14 = vsyncpa %s13, 0
    loop: start=0, step=1, limit=4
    $region2: #{tpu_custom_call.1} parent=1 // loop_pre_header
      _
    $region3: #{tpu_custom_call.1} parent=1 // loop_header
      %s16 = sphi 0, %s20
      %p17 = scmp.ge.s32.totalorder %s16, 4
      %s23 = sphi 0, %s35
      %s24 = sphi 0, %s31
      %s25 = sphi 0, %s23
      %s26 = sphi 0, %s24
      %s27 = sphi 0, %s25
      %s28 = sphi 0, %s26
      %s40 = sphi 0, %s42
      %s43 = sphi 0, %s40
      %s44 = sphi 0, %s43
      %s60 = sphi 0, %s44
      %s68 = sphi 0, %s70
      %s71 = sphi 0, %s68
      %s72 = sphi 0, %s71
      %s88 = sphi 0, %s72
      %s96 = sphi 0, %s98
      %s99 = sphi 0, %s96
      %s100 = sphi 0, %s99
      %s116 = sphi 0, %s100
      %s124 = sphi 0, %s126
      %s127 = sphi 0, %s124
      %s128 = sphi 0, %s127
      %s144 = sphi 0, %s128
      %s150 = sphi 0, %s152
      %s153 = sphi 0, %s150
      %s154 = sphi 0, %s153
      %s170 = sphi 0, %s154
      %s176 = sphi 0, %s178
      %s179 = sphi 0, %s176
      %s180 = sphi 0, %s179
      %s196 = sphi 0, %s180
      %s202 = sphi 0, %s204
      %s205 = sphi 0, %s202
      %s206 = sphi 0, %s205
      %s222 = sphi 0, %s206
    $region4: #{tpu_custom_call.1} parent=1 // loop_header_branch
      %19 = sbr.rel (%p17) target = $region8
    $region5: #{tpu_custom_call.1} parent=1 // loop_body
      %s21 = ssub.s32 %s16, 1
      %s22 = ssub.s32 %s16, 2
      %s29 = sadd.s32 1, %s24
      %p30 = scmp.ge.s32.totalorder %s29, 1
      %s31 = scalar_select %p30, 0, %s29
      %s32 = sadd.s32 1, %s23
      %s33 = scalar_select %p30, %s32, %s23
      %p34 = scmp.ge.s32.totalorder %s33, 2
      %s35 = scalar_select %p34, 0, %s33
      %s36 = ssub.s32 %s23, %s35
      %s37 = ssub.s32 %s24, %s31
      %s38 = sor.u32 %s36, %s37
      %p39 = scmp.eq.s32.totalorder %s38, 0
      %s41 = sadd.s32 %s40, 1
      %s42 = scalar_select %p39, %s40, %s41
      %p45 = pneg %p39
      %p46 = scmp.eq.s32.totalorder %s16, 1
      %p47 = por %p45, %p46
      %p48 = scmp.ne.s32.totalorder %s40, %s43
      %p49 = scmp.eq.s32.totalorder %s16, 0
      %p50 = por %p48, %p49
      %p51 = scmp.ne.s32.totalorder %s40, %s43
      %p52 = scmp.eq.s32.totalorder %s21, 1
      %p53 = por %p51, %p52
      %p54 = scmp.ne.s32.totalorder %s43, %s44
      %p55 = scmp.eq.s32.totalorder %s21, 0
      %p56 = por %p54, %p55
      %p57 = scmp.ne.s32.totalorder %s43, %s44
      %p58 = scmp.eq.s32.totalorder %s22, 1
      %p59 = por %p57, %p58
      %p61 = scmp.ne.s32.totalorder %s44, %s60
      %p62 = scmp.eq.s32.totalorder %s22, 0
      %p63 = por %p61, %p62
      %s64 = ssub.s32 %s23, %s35
      %s65 = ssub.s32 %s24, %s31
      %s66 = sor.u32 %s64, %s65
      %p67 = scmp.eq.s32.totalorder %s66, 0
      %s69 = sadd.s32 %s68, 1
      %s70 = scalar_select %p67, %s68, %s69
      %p73 = pneg %p67
      %p74 = scmp.eq.s32.totalorder %s16, 1
      %p75 = por %p73, %p74
      %p76 = scmp.ne.s32.totalorder %s68, %s71
      %p77 = scmp.eq.s32.totalorder %s16, 0
      %p78 = por %p76, %p77
      %p79 = scmp.ne.s32.totalorder %s68, %s71
      %p80 = scmp.eq.s32.totalorder %s21, 1
      %p81 = por %p79, %p80
      %p82 = scmp.ne.s32.totalorder %s71, %s72
      %p83 = scmp.eq.s32.totalorder %s21, 0
      %p84 = por %p82, %p83
      %p85 = scmp.ne.s32.totalorder %s71, %s72
      %p86 = scmp.eq.s32.totalorder %s22, 1
      %p87 = por %p85, %p86
      %p89 = scmp.ne.s32.totalorder %s72, %s88
      %p90 = scmp.eq.s32.totalorder %s22, 0
      %p91 = por %p89, %p90
      %s92 = ssub.s32 %s23, %s35
      %s93 = ssub.s32 %s24, %s31
      %s94 = sor.u32 %s92, %s93
      %p95 = scmp.eq.s32.totalorder %s94, 0
      %s97 = sadd.s32 %s96, 1
      %s98 = scalar_select %p95, %s96, %s97
      %p101 = pneg %p95
      %p102 = scmp.eq.s32.totalorder %s16, 1
      %p103 = por %p101, %p102
      %p104 = scmp.ne.s32.totalorder %s96, %s99
      %p105 = scmp.eq.s32.totalorder %s16, 0
      %p106 = por %p104, %p105
      %p107 = scmp.ne.s32.totalorder %s96, %s99
      %p108 = scmp.eq.s32.totalorder %s21, 1
      %p109 = por %p107, %p108
      %p110 = scmp.ne.s32.totalorder %s99, %s100
      %p111 = scmp.eq.s32.totalorder %s21, 0
      %p112 = por %p110, %p111
      %p113 = scmp.ne.s32.totalorder %s99, %s100
      %p114 = scmp.eq.s32.totalorder %s22, 1
      %p115 = por %p113, %p114
      %p117 = scmp.ne.s32.totalorder %s100, %s116
      %p118 = scmp.eq.s32.totalorder %s22, 0
      %p119 = por %p117, %p118
      %s120 = ssub.s32 %s23, %s35
      %s121 = ssub.s32 %s24, %s31
      %s122 = sor.u32 %s120, %s121
      %p123 = scmp.eq.s32.totalorder %s122, 0
      %s125 = sadd.s32 %s124, 1
      %s126 = scalar_select %p123, %s124, %s125
      %p129 = pneg %p123
      %p130 = scmp.eq.s32.totalorder %s16, 1
      %p131 = por %p129, %p130
      %p132 = scmp.ne.s32.totalorder %s124, %s127
      %p133 = scmp.eq.s32.totalorder %s16, 0
      %p134 = por %p132, %p133
      %p135 = scmp.ne.s32.totalorder %s124, %s127
      %p136 = scmp.eq.s32.totalorder %s21, 1
      %p137 = por %p135, %p136
      %p138 = scmp.ne.s32.totalorder %s127, %s128
      %p139 = scmp.eq.s32.totalorder %s21, 0
      %p140 = por %p138, %p139
      %p141 = scmp.ne.s32.totalorder %s127, %s128
      %p142 = scmp.eq.s32.totalorder %s22, 1
      %p143 = por %p141, %p142
      %p145 = scmp.ne.s32.totalorder %s128, %s144
      %p146 = scmp.eq.s32.totalorder %s22, 0
      %p147 = por %p145, %p146
      %s148 = ssub.s32 %s23, %s35
      %p149 = scmp.eq.s32.totalorder %s148, 0
      %s151 = sadd.s32 %s150, 1
      %s152 = scalar_select %p149, %s150, %s151
      %p155 = pneg %p149
      %p156 = scmp.eq.s32.totalorder %s16, 1
      %p157 = por %p155, %p156
      %p158 = scmp.ne.s32.totalorder %s150, %s153
      %p159 = scmp.eq.s32.totalorder %s16, 0
      %p160 = por %p158, %p159
      %p161 = scmp.ne.s32.totalorder %s150, %s153
      %p162 = scmp.eq.s32.totalorder %s21, 1
      %p163 = por %p161, %p162
      %p164 = scmp.ne.s32.totalorder %s153, %s154
      %p165 = scmp.eq.s32.totalorder %s21, 0
      %p166 = por %p164, %p165
      %p167 = scmp.ne.s32.totalorder %s153, %s154
      %p168 = scmp.eq.s32.totalorder %s22, 1
      %p169 = por %p167, %p168
      %p171 = scmp.ne.s32.totalorder %s154, %s170
      %p172 = scmp.eq.s32.totalorder %s22, 0
      %p173 = por %p171, %p172
      %s174 = ssub.s32 %s23, %s35
      %p175 = scmp.eq.s32.totalorder %s174, 0
      %s177 = sadd.s32 %s176, 1
      %s178 = scalar_select %p175, %s176, %s177
      %p181 = pneg %p175
      %p182 = scmp.eq.s32.totalorder %s16, 1
      %p183 = por %p181, %p182
      %p184 = scmp.ne.s32.totalorder %s176, %s179
      %p185 = scmp.eq.s32.totalorder %s16, 0
      %p186 = por %p184, %p185
      %p187 = scmp.ne.s32.totalorder %s176, %s179
      %p188 = scmp.eq.s32.totalorder %s21, 1
      %p189 = por %p187, %p188
      %p190 = scmp.ne.s32.totalorder %s179, %s180
      %p191 = scmp.eq.s32.totalorder %s21, 0
      %p192 = por %p190, %p191
      %p193 = scmp.ne.s32.totalorder %s179, %s180
      %p194 = scmp.eq.s32.totalorder %s22, 1
      %p195 = por %p193, %p194
      %p197 = scmp.ne.s32.totalorder %s180, %s196
      %p198 = scmp.eq.s32.totalorder %s22, 0
      %p199 = por %p197, %p198
      %s200 = ssub.s32 %s23, %s35
      %p201 = scmp.eq.s32.totalorder %s200, 0
      %s203 = sadd.s32 %s202, 1
      %s204 = scalar_select %p201, %s202, %s203
      %p207 = pneg %p201
      %p208 = scmp.eq.s32.totalorder %s16, 1
      %p209 = por %p207, %p208
      %p210 = scmp.ne.s32.totalorder %s202, %s205
      %p211 = scmp.eq.s32.totalorder %s16, 0
      %p212 = por %p210, %p211
      %p213 = scmp.ne.s32.totalorder %s202, %s205
      %p214 = scmp.eq.s32.totalorder %s21, 1
      %p215 = por %p213, %p214
      %p216 = scmp.ne.s32.totalorder %s205, %s206
      %p217 = scmp.eq.s32.totalorder %s21, 0
      %p218 = por %p216, %p217
      %p219 = scmp.ne.s32.totalorder %s205, %s206
      %p220 = scmp.eq.s32.totalorder %s22, 1
      %p221 = por %p219, %p220
      %p223 = scmp.ne.s32.totalorder %s206, %s222
      %p224 = scmp.eq.s32.totalorder %s22, 0
      %p225 = por %p223, %p224
      %p226 = scmp.le.s32.totalorder 1, %s16
      %p227 = scmp.lt.s32.totalorder %s16, 3
      %p228 = pnand %p226, %p227
      %p229 = pneg %p228
      // Predicated region
      $region9: #{tpu_custom_call.1} parent=5 // pred_check
        _
      $region10: #{tpu_custom_call.1} parent=5 // pred_check_branch
        %231 = sbr.rel (%p228) target = $region12
      $region11: #{tpu_custom_call.1} parent=5 // pred_region
        %s232 = ssub.s32 %s16, 1
      $region12: #{tpu_custom_call.1} parent=5 // pred_fallthru
        _
      %p233 = scmp.lt.s32.totalorder %s16, 2
      // Predicated region
      $region13: #{tpu_custom_call.1} parent=5 // pred_check
        %p234 = pneg %p233
      $region14: #{tpu_custom_call.1} parent=5 // pred_check_branch
        %236 = sbr.rel (%p234) target = $region16
      $region15: #{tpu_custom_call.1} parent=5 // pred_region
        // Predicated region
        $region17: #{tpu_custom_call.1} parent=15 // pred_check
          %p237 = pneg %p50
        $region18: #{tpu_custom_call.1} parent=15 // pred_check_branch
          %239 = sbr.rel (%p237) target = $region20
        $region19: #{tpu_custom_call.1} parent=15 // pred_region
          %s240 = smul.u32 5, %s24
          %p241 = scmp.lt.s32.totalorder %s23, 1
          %s242 = scalar_select %p241, %s23, 1
          %p243 = scmp.lt.s32.totalorder %s240, 4
          %s244 = scalar_select %p243, %s240, 4
          %s245 = smul.addr %s242, 5
          %s246 = sadd.s32 %s244, %s245
          %s247 = smul.addr %s246, 2
          %s248 = scalar_lea.vmem %s0, %s247
          %s249 = smul.u32 5, %s24
        $region20: #{tpu_custom_call.1} parent=15 // pred_fallthru
          _
        // Predicated region
        $region21: #{tpu_custom_call.1} parent=15 // pred_check
          %p250 = pneg %p78
        $region22: #{tpu_custom_call.1} parent=15 // pred_check_branch
          %252 = sbr.rel (%p250) target = $region24
        $region23: #{tpu_custom_call.1} parent=15 // pred_region
          %s253 = smul.u32 5, %s24
          %p254 = scmp.lt.s32.totalorder %s23, 1
          %s255 = scalar_select %p254, %s23, 1
          %p256 = scmp.lt.s32.totalorder %s253, 4
          %s257 = scalar_select %p256, %s253, 4
          %s258 = smul.addr %s255, 15
          %s259 = sadd.s32 %s257, %s258
          %s260 = smul.addr %s259, 4
          %s261 = scalar_lea.vmem %s1, %s260
          %s262 = smul.u32 5, %s24
        $region24: #{tpu_custom_call.1} parent=15 // pred_fallthru
          _
        // Predicated region
        $region25: #{tpu_custom_call.1} parent=15 // pred_check
          %p263 = pneg %p106
        $region26: #{tpu_custom_call.1} parent=15 // pred_check_branch
          %265 = sbr.rel (%p263) target = $region28
        $region27: #{tpu_custom_call.1} parent=15 // pred_region
          %s266 = smul.u32 5, %s24
          %p267 = scmp.lt.s32.totalorder %s23, 1
          %s268 = scalar_select %p267, %s23, 1
          %p269 = scmp.lt.s32.totalorder %s266, 4
          %s270 = scalar_select %p269, %s266, 4
          %s271 = smul.addr %s268, 20
          %s272 = sadd.s32 %s270, %s271
          %s273 = smul.addr %s272, 8
          %s274 = scalar_lea.vmem %s2, %s273
          %s275 = smul.u32 5, %s24
        $region28: #{tpu_custom_call.1} parent=15 // pred_fallthru
          _
      $region16: #{tpu_custom_call.1} parent=5 // pred_fallthru
        _
      %p276 = scmp.le.s32.totalorder 1, %s16
      %p277 = scmp.lt.s32.totalorder %s16, 3
      %p278 = pnand %p276, %p277
      %p279 = pneg %p278
      // Predicated region
      $region29: #{tpu_custom_call.1} parent=5 // pred_check
        _
      $region30: #{tpu_custom_call.1} parent=5 // pred_check_branch
        %281 = sbr.rel (%p278) target = $region32
      $region31: #{tpu_custom_call.1} parent=5 // pred_region
        %s282 = ssub.s32 %s16, 1
        %s283 = smul.u32 5, %s26
        %p284 = scmp.lt.s32.totalorder %s25, 1
        %s285 = scalar_select %p284, %s25, 1
        %p286 = scmp.lt.s32.totalorder %s283, 4
        %s287 = scalar_select %p286, %s283, 4
        %s288 = smul.addr %s285, 5
        %s289 = sadd.s32 %s287, %s288
        %s290 = smul.addr %s289, 2
        %s291 = scalar_lea.vmem %s0, %s290
        %p292 = pneg %p56
        %p293 = pneg %p53
        %s294 = smul.u32 5, %s26
        %p295 = scmp.lt.s32.totalorder %s25, 1
        %s296 = scalar_select %p295, %s25, 1
        %p297 = scmp.lt.s32.totalorder %s294, 4
        %s298 = scalar_select %p297, %s294, 4
        %s299 = smul.addr %s296, 15
        %s300 = sadd.s32 %s298, %s299
        %s301 = smul.addr %s300, 4
        %s302 = scalar_lea.vmem %s1, %s301
        %p303 = pneg %p84
        %p304 = pneg %p81
        %s305 = smul.u32 5, %s26
        %p306 = scmp.lt.s32.totalorder %s25, 1
        %s307 = scalar_select %p306, %s25, 1
        %p308 = scmp.lt.s32.totalorder %s305, 4
        %s309 = scalar_select %p308, %s305, 4
        %s310 = smul.addr %s307, 20
        %s311 = sadd.s32 %s309, %s310
        %s312 = smul.addr %s311, 8
        %s313 = scalar_lea.vmem %s2, %s312
        %p314 = pneg %p112
        %p315 = pneg %p109
        %p316 = pneg %p140
        %p317 = pneg %p137
        %s318 = sand.u32 %s127, 1
        %s319 = scalar_lea.sflag [#allocation3], %s318
        %s320 = sand.u32 %s127, 1
        %s321 = smul.addr %s320, 10
        %s322 = scalar_lea.vmem [#allocation2], %s321
        %p323 = pneg %p166
        %p324 = pneg %p163
        %p325 = scmp.lt.s32.totalorder %s25, 1
        %s326 = scalar_select %p325, %s25, 1
        %s327 = scalar_lea.vmem %s4, %s326
        %p328 = pneg %p192
        %p329 = pneg %p189
        %p330 = scmp.lt.s32.totalorder %s25, 1
        %s331 = scalar_select %p330, %s25, 1
        %s332 = scalar_lea.vmem %s5, %s331
        %p333 = pneg %p218
        %p334 = pneg %p215
        %p335 = scmp.lt.s32.totalorder %s25, 1
        %s336 = scalar_select %p335, %s25, 1
        %s337 = scalar_lea.vmem %s6, %s336
        %s338 = smul.u32 5, %s26
        %p339 = scmp.lt.s32.totalorder %s25, 1
        %s340 = scalar_select %p339, %s25, 1
        %p341 = scmp.lt.s32.totalorder %s338, 4
        %s342 = scalar_select %p341, %s338, 4
        %s343 = smul.addr %s340, 5
        %s344 = sadd.s32 %s342, %s343
        %s345 = smul.addr %s344, 2
        %s346 = scalar_lea.vmem %s0, %s345
        %s347 = smul.u32 5, %s26
        %s348 = smul.u32 5, %s26
        %p349 = scmp.lt.s32.totalorder %s25, 1
        %s350 = scalar_select %p349, %s25, 1
        %p351 = scmp.lt.s32.totalorder %s348, 4
        %s352 = scalar_select %p351, %s348, 4
        %s353 = smul.addr %s350, 15
        %s354 = sadd.s32 %s352, %s353
        %s355 = smul.addr %s354, 4
        %s356 = scalar_lea.vmem %s1, %s355
        %s357 = smul.u32 5, %s26
        %s358 = smul.u32 5, %s26
        %p359 = scmp.lt.s32.totalorder %s25, 1
        %s360 = scalar_select %p359, %s25, 1
        %p361 = scmp.lt.s32.totalorder %s358, 4
        %s362 = scalar_select %p361, %s358, 4
        %s363 = smul.addr %s360, 20
        %s364 = sadd.s32 %s362, %s363
        %s365 = smul.addr %s364, 8
        %s366 = scalar_lea.vmem %s2, %s365
        %s367 = smul.u32 5, %s26
        %s368 = smul.u32 5, %s26
        %p369 = scmp.lt.s32.totalorder %s25, 1
        %s370 = scalar_select %p369, %s25, 1
        %s371 = scalar_lea.vmem %s4, %s370
        %p372 = scmp.lt.s32.totalorder %s25, 1
        %s373 = scalar_select %p372, %s25, 1
        %s374 = scalar_lea.vmem %s5, %s373
        %p375 = scmp.lt.s32.totalorder %s25, 1
        %s376 = scalar_select %p375, %s25, 1
        %s377 = scalar_lea.vmem %s6, %s376
        %p378 = scmp.eq.s32.totalorder %s26, 0
        // Predicated region
        $region33: #{tpu_custom_call.1} parent=31 // pred_check
          %p379 = pneg %p378
        $region34: #{tpu_custom_call.1} parent=31 // pred_check_branch
          %381 = sbr.rel (%p379) target = $region36
        $region35: #{tpu_custom_call.1} parent=31 // pred_region
          %vm382 = vcmask 0
          %383 = vst.msk [vmem:[%s371] sm:$0x1] %vm382, 0.0
          %384 = vst.msk [vmem:[%s374] sm:$0x1] %vm382, 0.0
          %385 = vst.msk [vmem:[%s377] sm:$0x1] %vm382, 0.0
        $region36: #{tpu_custom_call.1} parent=31 // pred_fallthru
          _
        %v386 = vld [vmem:[%s346] sm:$0xff]
        %v387 = vld [vmem:[%s346 + $0x8] sm:$0x3]
        %v388 = vunpack.c.l.bf16 %v386
        %v389 = vunpack.c.h.bf16 %v386
        %v390 = vunpack.c.l.bf16 %v387
        %v391 = vld [vmem:[%s356] sm:$0xff]
        %v392 = vld [vmem:[%s356 + $0x8] sm:$0xff]
        %v393 = vld [vmem:[%s356 + $0x10] sm:$0xf]
        %v394 = vld [vmem:[%s356 + $0x14] sm:$0xff]
        %v395 = vld [vmem:[%s356 + $0x1c] sm:$0xff]
        %v396 = vld [vmem:[%s356 + $0x24] sm:$0xf]
        %v397 = vld [vmem:[%s356 + $0x28] sm:$0x77]
        %v398 = vld [vmem:[%s356 + $0x30] sm:$0x77]
        %v399 = vld [vmem:[%s356 + $0x38] sm:$0x7]
        %v400 = vunpack.c.l.bf16 %v391
        %v401 = vunpack.c.h.bf16 %v391
        %v402 = vunpack.c.l.bf16 %v392
        %v403 = vunpack.c.h.bf16 %v392
        %v404 = vunpack.c.l.bf16 %v393
        %v405 = vunpack.c.l.bf16 %v394
        %v406 = vunpack.c.h.bf16 %v394
        %v407 = vunpack.c.l.bf16 %v395
        %v408 = vunpack.c.h.bf16 %v395
        %v409 = vunpack.c.l.bf16 %v396
        %v410 = vunpack.c.l.bf16 %v397
        %v411 = vunpack.c.h.bf16 %v397
        %v412 = vunpack.c.l.bf16 %v398
        %v413 = vunpack.c.h.bf16 %v398
        %v414 = vunpack.c.l.bf16 %v399
        %v415 = vld [vmem:[%s366] sm:$0xff]
        %v416 = vld [vmem:[%s366 + $0x8] sm:$0xff]
        %v417 = vld [vmem:[%s366 + $0x10] sm:$0xff]
        %v418 = vld [vmem:[%s366 + $0x18] sm:$0xff]
        %v419 = vld [vmem:[%s366 + $0x20] sm:$0xff]
        %v420 = vld [vmem:[%s366 + $0x28] sm:$0xff]
        %v421 = vld [vmem:[%s366 + $0x30] sm:$0xff]
        %v422 = vld [vmem:[%s366 + $0x38] sm:$0xff]
        %v423 = vld [vmem:[%s366 + $0x40] sm:$0xff]
        %v424 = vld [vmem:[%s366 + $0x48] sm:$0xff]
        %v425 = vld [vmem:[%s366 + $0x50] sm:$0xff]
        %v426 = vld [vmem:[%s366 + $0x58] sm:$0xff]
        %v427 = vld [vmem:[%s366 + $0x60] sm:$0xff]
        %v428 = vld [vmem:[%s366 + $0x68] sm:$0xff]
        %v429 = vld [vmem:[%s366 + $0x70] sm:$0xff]
        %v430 = vld [vmem:[%s366 + $0x78] sm:$0x3]
        %v431 = vld [vmem:[%s366 + $0x80] sm:$0x3]
        %v432 = vld [vmem:[%s366 + $0x88] sm:$0x3]
        %v433 = vld [vmem:[%s366 + $0x90] sm:$0x3]
        %v434 = vld [vmem:[%s366 + $0x98] sm:$0x3]
        %v435 = vmax.f32 %v400, %v405
        %vm436 = vcmask 1044480
        %v437 = vsel %vm436, %v410, -inf
        %v438 = vmax.f32 %v435, %v437
        %v439 = vrot.slane %v438, 4
        %v440 = vmax.f32 %v438, %v439
        %v441 = vrot.slane %v440, 2
        %v442 = vmax.f32 %v440, %v441
        %v443 = vrot.slane %v442, 1
        %v444 = vmax.f32 %v442, %v443
        %v445 = vmax.f32 %v401, %v406
        %v446 = vsel %vm436, %v411, -inf
        %v447 = vmax.f32 %v445, %v446
        %v448 = vrot.slane %v447, 4
        %v449 = vmax.f32 %v447, %v448
        %v450 = vrot.slane %v449, 2
        %v451 = vmax.f32 %v449, %v450
        %v452 = vrot.slane %v451, 1
        %v453 = vmax.f32 %v451, %v452
        %v454 = vmax.f32 %v402, %v407
        %v455 = vsel %vm436, %v412, -inf
        %v456 = vmax.f32 %v454, %v455
        %v457 = vrot.slane %v456, 4
        %v458 = vmax.f32 %v456, %v457
        %v459 = vrot.slane %v458, 2
        %v460 = vmax.f32 %v458, %v459
        %v461 = vrot.slane %v460, 1
        %v462 = vmax.f32 %v460, %v461
        %v463 = vmax.f32 %v403, %v408
        %v464 = vsel %vm436, %v413, -inf
        %v465 = vmax.f32 %v463, %v464
        %v466 = vrot.slane %v465, 4
        %v467 = vmax.f32 %v465, %v466
        %v468 = vrot.slane %v467, 2
        %v469 = vmax.f32 %v467, %v468
        %v470 = vrot.slane %v469, 1
        %v471 = vmax.f32 %v469, %v470
        %vm472 = vcmask 719872
        %v473 = vsel %vm472, %v404, -inf
        %v474 = vsel %vm472, %v409, -inf
        %v475 = vmax.f32 %v473, %v474
        %vm476 = vcmask 716800
        %v477 = vsel %vm476, %v414, -inf
        %v478 = vmax.f32 %v475, %v477
        %v479 = vrot.slane %v478, 4
        %v480 = vmax.f32 %v478, %v479
        %v481 = vrot.slane %v480, 2
        %v482 = vmax.f32 %v480, %v481
        %v483 = vrot.slane %v482, 1
        %v484 = vmax.f32 %v482, %v483
        %v485 = vsub.f32 %v400, %v444
        %v486 = vsub.f32 %v401, %v453
        %v487 = vsub.f32 %v402, %v462
        %v488 = vsub.f32 %v403, %v471
        %v489 = vsub.f32 %v404, %v484
        %v490 = vsub.f32 %v405, %v444
        %v491 = vsub.f32 %v406, %v453
        %v492 = vsub.f32 %v407, %v462
        %v493 = vsub.f32 %v408, %v471
        %v494 = vsub.f32 %v409, %v484
        %v495 = vsub.f32 %v410, %v444
        %v496 = vsub.f32 %v411, %v453
        %v497 = vsub.f32 %v412, %v462
        %v498 = vsub.f32 %v413, %v471
        %v499 = vsub.f32 %v414, %v484
        %v500 = vmul.f32 %v485, 1.442695
        %v501 = vpow.pop %v500
        %v502 = vmul.f32 %v486, 1.442695
        %v503 = vpow.pop %v502
        %v504 = vmul.f32 %v487, 1.442695
        %v505 = vpow.pop %v504
        %v506 = vmul.f32 %v488, 1.442695
        %v507 = vpow.pop %v506
        %v508 = vmul.f32 %v489, 1.442695
        %v509 = vpow.pop %v508
        %v510 = vmul.f32 %v490, 1.442695
        %v511 = vpow.pop %v510
        %v512 = vmul.f32 %v491, 1.442695
        %v513 = vpow.pop %v512
        %v514 = vmul.f32 %v492, 1.442695
        %v515 = vpow.pop %v514
        %v516 = vmul.f32 %v493, 1.442695
        %v517 = vpow.pop %v516
        %v518 = vmul.f32 %v494, 1.442695
        %v519 = vpow.pop %v518
        %v520 = vmul.f32 %v495, 1.442695
        %v521 = vpow.pop %v520
        %v522 = vmul.f32 %v496, 1.442695
        %v523 = vpow.pop %v522
        %v524 = vmul.f32 %v497, 1.442695
        %v525 = vpow.pop %v524
        %v526 = vmul.f32 %v498, 1.442695
        %v527 = vpow.pop %v526
        %v528 = vmul.f32 %v499, 1.442695
        %v529 = vpow.pop %v528
        %v530 = vadd.f32 %v501, %v511
        %v531 = vsel %vm436, %v521, 0.0
        %v532 = vadd.f32 %v530, %v531
        %v533 = vrot.slane %v532, 4
        %v534 = vadd.f32 %v532, %v533
        %v535 = vrot.slane %v534, 2
        %v536 = vadd.f32 %v534, %v535
        %v537 = vrot.slane %v536, 1
        %v538 = vadd.f32 %v536, %v537
        %v539 = vadd.f32 %v503, %v513
        %v540 = vsel %vm436, %v523, 0.0
        %v541 = vadd.f32 %v539, %v540
        %v542 = vrot.slane %v541, 4
        %v543 = vadd.f32 %v541, %v542
        %v544 = vrot.slane %v543, 2
        %v545 = vadd.f32 %v543, %v544
        %v546 = vrot.slane %v545, 1
        %v547 = vadd.f32 %v545, %v546
        %v548 = vadd.f32 %v505, %v515
        %v549 = vsel %vm436, %v525, 0.0
        %v550 = vadd.f32 %v548, %v549
        %v551 = vrot.slane %v550, 4
        %v552 = vadd.f32 %v550, %v551
        %v553 = vrot.slane %v552, 2
        %v554 = vadd.f32 %v552, %v553
        %v555 = vrot.slane %v554, 1
        %v556 = vadd.f32 %v554, %v555
        %v557 = vadd.f32 %v507, %v517
        %v558 = vsel %vm436, %v527, 0.0
        %v559 = vadd.f32 %v557, %v558
        %v560 = vrot.slane %v559, 4
        %v561 = vadd.f32 %v559, %v560
        %v562 = vrot.slane %v561, 2
        %v563 = vadd.f32 %v561, %v562
        %v564 = vrot.slane %v563, 1
        %v565 = vadd.f32 %v563, %v564
        %v566 = vsel %vm472, %v509, 0.0
        %v567 = vsel %vm472, %v519, 0.0
        %v568 = vadd.f32 %v566, %v567
        %v569 = vsel %vm476, %v529, 0.0
        %v570 = vadd.f32 %v568, %v569
        %v571 = vrot.slane %v570, 4
        %v572 = vadd.f32 %v570, %v571
        %v573 = vrot.slane %v572, 2
        %v574 = vadd.f32 %v572, %v573
        %v575 = vrot.slane %v574, 1
        %v576 = vadd.f32 %v574, %v575
        %v577 = vlog2.pop %v538
        %v578 = vmul.f32 %v577, 0.6931472
        %v579 = vlog2.pop %v547
        %v580 = vmul.f32 %v579, 0.6931472
        %v581 = vlog2.pop %v556
        %v582 = vmul.f32 %v581, 0.6931472
        %v583 = vlog2.pop %v565
        %v584 = vmul.f32 %v583, 0.6931472
        %v585 = vlog2.pop %v576
        %v586 = vmul.f32 %v585, 0.6931472
        %v587 = vsub.f32 %v485, %v578
        %v588 = vsub.f32 %v486, %v580
        %v589 = vsub.f32 %v487, %v582
        %v590 = vsub.f32 %v488, %v584
        %v591 = vsub.f32 %v489, %v586
        %v592 = vsub.f32 %v490, %v578
        %v593 = vsub.f32 %v491, %v580
        %v594 = vsub.f32 %v492, %v582
        %v595 = vsub.f32 %v493, %v584
        %v596 = vsub.f32 %v494, %v586
        %v597 = vsub.f32 %v495, %v578
        %v598 = vsub.f32 %v496, %v580
        %v599 = vsub.f32 %v497, %v582
        %v600 = vsub.f32 %v498, %v584
        %v601 = vsub.f32 %v499, %v586
        %v602 = vmax.f32 %v587, -16.118095
        %v603 = vmax.f32 %v588, -16.118095
        %v604 = vmax.f32 %v589, -16.118095
        %v605 = vmax.f32 %v590, -16.118095
        %v606 = vmax.f32 %v591, -16.118095
        %v607 = vmax.f32 %v592, -16.118095
        %v608 = vmax.f32 %v593, -16.118095
        %v609 = vmax.f32 %v594, -16.118095
        %v610 = vmax.f32 %v595, -16.118095
        %v611 = vmax.f32 %v596, -16.118095
        %v612 = vmax.f32 %v597, -16.118095
        %v613 = vmax.f32 %v598, -16.118095
        %v614 = vmax.f32 %v599, -16.118095
        %v615 = vmax.f32 %v600, -16.118095
        %v616 = vmax.f32 %v601, -16.118095
        %vm632 = vcmask 1043456
        %v633 = vrot.slane %v602, 4
        %v634 = vrot.slane %v603, 4
        %v635 = vrot.slane %v604, 4
        %v636 = vrot.slane %v605, 4
        %v637 = vrot.slane %v606, 4
        %v638 = vrot.slane %v607, 4
        %v639 = vsel %vm632, %v633, %v638
        %v640 = vrot.slane %v608, 4
        %v641 = vsel %vm632, %v634, %v640
        %v642 = vrot.slane %v609, 4
        %v643 = vsel %vm632, %v635, %v642
        %v644 = vrot.slane %v610, 4
        %v645 = vsel %vm632, %v636, %v644
        %v646 = vrot.slane %v611, 4
        %v647 = vsel %vm632, %v637, %v646
        %v648 = vrot.slane %v612, 4
        %v649 = vsel %vm632, %v638, %v648
        %v650 = vrot.slane %v613, 4
        %v651 = vsel %vm632, %v640, %v650
        %v652 = vrot.slane %v614, 4
        %v653 = vsel %vm632, %v642, %v652
        %v654 = vrot.slane %v615, 4
        %v655 = vsel %vm632, %v644, %v654
        %v656 = vrot.slane %v616, 4
        %v657 = vsel %vm632, %v646, %v656
        %v678 = vmul.f32 %v415, %v633
        %v679 = vmul.f32 %v416, %v634
        %v680 = vmul.f32 %v417, %v635
        %v681 = vmul.f32 %v418, %v636
        %v682 = vmul.f32 %v419, %v637
        %v683 = vmul.f32 %v420, %v639
        %v684 = vmul.f32 %v421, %v641
        %v685 = vmul.f32 %v422, %v643
        %v686 = vmul.f32 %v423, %v645
        %v687 = vmul.f32 %v424, %v647
        %v688 = vmul.f32 %v425, %v649
        %v689 = vmul.f32 %v426, %v651
        %v690 = vmul.f32 %v427, %v653
        %v691 = vmul.f32 %v428, %v655
        %v692 = vmul.f32 %v429, %v657
        %v693 = vmul.f32 %v430, %v648
        %v694 = vmul.f32 %v431, %v650
        %v695 = vmul.f32 %v432, %v652
        %v696 = vmul.f32 %v433, %v654
        %v697 = vmul.f32 %v434, %v656
        %v718 = vrot.slane %v678, 4
        %v719 = vrot.slane %v683, 4
        %v720 = vsel %vm632, %v718, %v719
        %v721 = vrot.slane %v679, 4
        %v722 = vrot.slane %v684, 4
        %v723 = vsel %vm632, %v721, %v722
        %v724 = vrot.slane %v680, 4
        %v725 = vrot.slane %v685, 4
        %v726 = vsel %vm632, %v724, %v725
        %v727 = vrot.slane %v681, 4
        %v728 = vrot.slane %v686, 4
        %v729 = vsel %vm632, %v727, %v728
        %v730 = vrot.slane %v682, 4
        %v731 = vrot.slane %v687, 4
        %v732 = vsel %vm632, %v730, %v731
        %v733 = vrot.slane %v688, 4
        %v734 = vsel %vm632, %v719, %v733
        %v735 = vrot.slane %v689, 4
        %v736 = vsel %vm632, %v722, %v735
        %v737 = vrot.slane %v690, 4
        %v738 = vsel %vm632, %v725, %v737
        %v739 = vrot.slane %v691, 4
        %v740 = vsel %vm632, %v728, %v739
        %v741 = vrot.slane %v692, 4
        %v742 = vsel %vm632, %v731, %v741
        %v743 = vrot.slane %v693, 4
        %v744 = vsel %vm632, %v733, %v743
        %v745 = vrot.slane %v694, 4
        %v746 = vsel %vm632, %v735, %v745
        %v747 = vrot.slane %v695, 4
        %v748 = vsel %vm632, %v737, %v747
        %v749 = vrot.slane %v696, 4
        %v750 = vsel %vm632, %v739, %v749
        %v751 = vrot.slane %v697, 4
        %v752 = vsel %vm632, %v741, %v751
        %v768 = vadd.f32 %v720, %v734
        %v769 = vsel %vm436, %v744, 0.0
        %v770 = vadd.f32 %v768, %v769
        %v771 = vrot.slane %v770, 4
        %v772 = vadd.f32 %v770, %v771
        %v773 = vrot.slane %v772, 2
        %v774 = vadd.f32 %v772, %v773
        %v775 = vrot.slane %v774, 1
        %v776 = vadd.f32 %v774, %v775
        %v777 = vadd.f32 %v723, %v736
        %v778 = vsel %vm436, %v746, 0.0
        %v779 = vadd.f32 %v777, %v778
        %v780 = vrot.slane %v779, 4
        %v781 = vadd.f32 %v779, %v780
        %v782 = vrot.slane %v781, 2
        %v783 = vadd.f32 %v781, %v782
        %v784 = vrot.slane %v783, 1
        %v785 = vadd.f32 %v783, %v784
        %v786 = vadd.f32 %v726, %v738
        %v787 = vsel %vm436, %v748, 0.0
        %v788 = vadd.f32 %v786, %v787
        %v789 = vrot.slane %v788, 4
        %v790 = vadd.f32 %v788, %v789
        %v791 = vrot.slane %v790, 2
        %v792 = vadd.f32 %v790, %v791
        %v793 = vrot.slane %v792, 1
        %v794 = vadd.f32 %v792, %v793
        %v795 = vadd.f32 %v729, %v740
        %v796 = vsel %vm436, %v750, 0.0
        %v797 = vadd.f32 %v795, %v796
        %v798 = vrot.slane %v797, 4
        %v799 = vadd.f32 %v797, %v798
        %v800 = vrot.slane %v799, 2
        %v801 = vadd.f32 %v799, %v800
        %v802 = vrot.slane %v801, 1
        %v803 = vadd.f32 %v801, %v802
        %v804 = vsel %vm472, %v732, 0.0
        %v805 = vsel %vm472, %v742, 0.0
        %v806 = vadd.f32 %v804, %v805
        %v807 = vsel %vm476, %v752, 0.0
        %v808 = vadd.f32 %v806, %v807
        %v809 = vrot.slane %v808, 4
        %v810 = vadd.f32 %v808, %v809
        %v811 = vrot.slane %v810, 2
        %v812 = vadd.f32 %v810, %v811
        %v813 = vrot.slane %v812, 1
        %v814 = vadd.f32 %v812, %v813
        %v815 = vsub.f32 0.0, %v776
        %v816 = vsub.f32 0.0, %v785
        %v817 = vsub.f32 0.0, %v794
        %v818 = vsub.f32 0.0, %v803
        %v819 = vsub.f32 0.0, %v814
        %v822 = vcombine.high %v388, %v388
        %v823 = vcombine.high %v389, %v389
        %v826 = vsub.f32 %v415, %v388
        %v827 = vsub.f32 %v416, %v822
        %v828 = vsub.f32 %v417, %v389
        %v829 = vsub.f32 %v418, %v823
        %v830 = vsub.f32 %v419, %v390
        %v831 = vand.u32 2147483647, %v826
        %v832 = vand.u32 2147483647, %v827
        %v833 = vand.u32 2147483647, %v828
        %v834 = vand.u32 2147483647, %v829
        %v835 = vand.u32 2147483647, %v830
        %vm836 = vcmp.lt.f32.partialorder %v831, 1.0
        %vm837 = vcmp.lt.f32.partialorder %v832, 1.0
        %vm838 = vcmp.lt.f32.partialorder %v833, 1.0
        %vm839 = vcmp.lt.f32.partialorder %v834, 1.0
        %vm840 = vcmp.lt.f32.partialorder %v835, 1.0
        %v841 = vmul.f32 %v826, 0.5
        %v842 = vmul.f32 %v827, 0.5
        %v843 = vmul.f32 %v828, 0.5
        %v844 = vmul.f32 %v829, 0.5
        %v845 = vmul.f32 %v830, 0.5
        %v846 = vmul.f32 %v841, %v826
        %v847 = vmul.f32 %v842, %v827
        %v848 = vmul.f32 %v843, %v828
        %v849 = vmul.f32 %v844, %v829
        %v850 = vmul.f32 %v845, %v830
        %v851 = vsub.f32 %v831, 0.5
        %v852 = vsub.f32 %v832, 0.5
        %v853 = vsub.f32 %v833, 0.5
        %v854 = vsub.f32 %v834, 0.5
        %v855 = vsub.f32 %v835, 0.5
        %v856 = vsel %vm836, %v846, %v851
        %v857 = vsel %vm837, %v847, %v852
        %v858 = vsel %vm838, %v848, %v853
        %v859 = vsel %vm839, %v849, %v854
        %v860 = vsel %vm840, %v850, %v855
        %v861 = vsel %vm632, %v856, 0.0
        %v862 = vrot.slane %v861, 4
        %v863 = vadd.f32 %v861, %v862
        %v864 = vrot.slane %v863, 2
        %v865 = vadd.f32 %v863, %v864
        %v866 = vrot.slane %v865, 1
        %v867 = vadd.f32 %v865, %v866
        %v868 = vsel %vm632, %v857, 0.0
        %v869 = vrot.slane %v868, 4
        %v870 = vadd.f32 %v868, %v869
        %v871 = vrot.slane %v870, 2
        %v872 = vadd.f32 %v870, %v871
        %v873 = vrot.slane %v872, 1
        %v874 = vadd.f32 %v872, %v873
        %v875 = vsel %vm632, %v858, 0.0
        %v876 = vrot.slane %v875, 4
        %v877 = vadd.f32 %v875, %v876
        %v878 = vrot.slane %v877, 2
        %v879 = vadd.f32 %v877, %v878
        %v880 = vrot.slane %v879, 1
        %v881 = vadd.f32 %v879, %v880
        %v882 = vsel %vm632, %v859, 0.0
        %v883 = vrot.slane %v882, 4
        %v884 = vadd.f32 %v882, %v883
        %v885 = vrot.slane %v884, 2
        %v886 = vadd.f32 %v884, %v885
        %v887 = vrot.slane %v886, 1
        %v888 = vadd.f32 %v886, %v887
        %vm889 = vcmask 715776
        %v890 = vsel %vm889, %v860, 0.0
        %v891 = vrot.slane %v890, 4
        %v892 = vadd.f32 %v890, %v891
        %v893 = vrot.slane %v892, 2
        %v894 = vadd.f32 %v892, %v893
        %v895 = vrot.slane %v894, 1
        %v896 = vadd.f32 %v894, %v895
        %v897 = vrcp.pop %v538
        %v898 = vmul.f32 1.0, %v897
        %v899 = vrcp.pop %v547
        %v900 = vmul.f32 1.0, %v899
        %v901 = vrcp.pop %v556
        %v902 = vmul.f32 1.0, %v901
        %v903 = vrcp.pop %v565
        %v904 = vmul.f32 1.0, %v903
        %v905 = vrcp.pop %v576
        %v906 = vmul.f32 1.0, %v905
        %v907 = vmul.f32 %v501, %v898
        %v908 = vmul.f32 %v503, %v900
        %v909 = vmul.f32 %v505, %v902
        %v910 = vmul.f32 %v507, %v904
        %v911 = vmul.f32 %v509, %v906
        %v912 = vsub.f32 1.0, %v907
        %v913 = vsub.f32 1.0, %v908
        %v914 = vsub.f32 1.0, %v909
        %v915 = vsub.f32 1.0, %v910
        %v916 = vsub.f32 1.0, %v911
        %v922 = vcombine.low %v815, %v816
        %v923 = vcombine.low %v817, %v818
        %v925 = vunpack.c.l.s4 1966171168
        %v926 = vunpack.c.0.s8 %v925
        %v927 = vlaneseq
        %v928 = vshrl.u32 %v927, 7
        %v929 = vsub.s32 %v926, %v928
        %v930 = vrot.slane %v922, %v929
        %v932 = vunpack.c.l.s4 1966171168
        %v933 = vunpack.c.0.s8 %v932
        %v934 = vlaneseq
        %v935 = vshrl.u32 %v934, 7
        %v936 = vsub.s32 %v933, %v935
        %v937 = vrot.slane %v923, %v936
        %v939 = vunpack.c.l.s4 1966171168
        %v940 = vunpack.c.0.s8 %v939
        %v941 = vlaneseq
        %v942 = vshrl.u32 %v941, 7
        %v943 = vsub.s32 %v940, %v942
        %v944 = vrot.slane %v819, %v943
        %v945 = vcombine.low %v930, %v937
        %v947 = vunpack.c.l.s4 1966171168
        %v948 = vunpack.c.0.s8 %v947
        %v949 = vlaneseq
        %v950 = vshrl.u32 %v949, 7
        %v951 = vsub.s32 %v948, %v950
        %v952 = vrot.slane %v945, %v951
        %v954 = vunpack.c.l.s4 1966171168
        %v955 = vunpack.c.0.s8 %v954
        %v956 = vlaneseq
        %v957 = vshrl.u32 %v956, 7
        %v958 = vsub.s32 %v955, %v957
        %v959 = vrot.slane %v944, %v958
        %v960 = vcombine.low %v952, %v959
        %v962 = vlaneseq
        %vm963 = vcmp.ge.s32.totalorder %v962, 0
        %vm964 = vcmp.lt.s32.totalorder %v962, 600
        %vm965 = vmand %vm963, %vm964
        %966 = vst.msk [vmem:[%s322] ss:$2 sm:$0x1f] %vm965, %v960
        %v967 = vsub.f32 1.0, %v430
        %v968 = vsub.f32 1.0, %v431
        %v969 = vsub.f32 1.0, %v432
        %v970 = vsub.f32 1.0, %v433
        %v971 = vsub.f32 1.0, %v434
        %v977 = vrot.slane %v967, 1
        %v978 = vrot.slane %v968, 1
        %v979 = vrot.slane %v969, 1
        %v980 = vrot.slane %v970, 1
        %v981 = vrot.slane %v971, 1
        %v987 = vmul.f32 %v912, %v977
        %v988 = vmul.f32 %v913, %v978
        %v989 = vmul.f32 %v914, %v979
        %v990 = vmul.f32 %v915, %v980
        %v991 = vmul.f32 %v916, %v981
        %v997 = vcombine.low %v987, %v988
        %v998 = vcombine.low %v989, %v990
        %v1000 = vunpack.c.l.s4 1966171168
        %v1001 = vunpack.c.0.s8 %v1000
        %v1002 = vlaneseq
        %v1003 = vshrl.u32 %v1002, 7
        %v1004 = vsub.s32 %v1001, %v1003
        %v1005 = vrot.slane %v997, %v1004
        %v1007 = vunpack.c.l.s4 1966171168
        %v1008 = vunpack.c.0.s8 %v1007
        %v1009 = vlaneseq
        %v1010 = vshrl.u32 %v1009, 7
        %v1011 = vsub.s32 %v1008, %v1010
        %v1012 = vrot.slane %v998, %v1011
        %v1014 = vunpack.c.l.s4 1966171168
        %v1015 = vunpack.c.0.s8 %v1014
        %v1016 = vlaneseq
        %v1017 = vshrl.u32 %v1016, 7
        %v1018 = vsub.s32 %v1015, %v1017
        %v1019 = vrot.slane %v991, %v1018
        %v1020 = vcombine.low %v1005, %v1012
        %v1022 = vunpack.c.l.s4 1966171168
        %v1023 = vunpack.c.0.s8 %v1022
        %v1024 = vlaneseq
        %v1025 = vshrl.u32 %v1024, 7
        %v1026 = vsub.s32 %v1023, %v1025
        %v1027 = vrot.slane %v1020, %v1026
        %v1029 = vunpack.c.l.s4 1966171168
        %v1030 = vunpack.c.0.s8 %v1029
        %v1031 = vlaneseq
        %v1032 = vshrl.u32 %v1031, 7
        %v1033 = vsub.s32 %v1030, %v1032
        %v1034 = vrot.slane %v1019, %v1033
        %v1035 = vcombine.low %v1027, %v1034
        %s1037 = scalar_lea.vmem %s322, 1 [#allocation2]
        %1038 = vst.msk [vmem:[%s1037] ss:$2 sm:$0x1f] %vm965, %v1035
        %v1039 = vld [vmem:[%s371] sm:$0x1]
        %v1040 = vmul.f32 %v867, %v430
        %v1041 = vmul.f32 %v874, %v431
        %v1042 = vmul.f32 %v881, %v432
        %v1043 = vmul.f32 %v888, %v433
        %v1044 = vmul.f32 %v896, %v434
        %vm1045 = vcmask 1041409
        %v1046 = vsel %vm1045, %v1040, 0.0
        %v1047 = vsel %vm1045, %v1041, 0.0
        %v1048 = vadd.f32 %v1046, %v1047
        %v1049 = vsel %vm1045, %v1042, 0.0
        %v1050 = vadd.f32 %v1048, %v1049
        %v1051 = vsel %vm1045, %v1043, 0.0
        %v1052 = vadd.f32 %v1050, %v1051
        %vm1053 = vcmask 713729
        %v1054 = vsel %vm1053, %v1044, 0.0
        %v1055 = vadd.f32 %v1052, %v1054
        %1056 = vadd.xlane.f32.xlu0 %v1055
        %v1057 = vpop.xlane.xlu0 %1056
        %v1059 = vlaneseq
        %v1060 = vshrl.u32 %v1059, 7
        %v1061 = vsub.s32 1, %v1060
        %v1062 = vrot.slane %v1057, %v1061
        %v1064 = vadd.f32 %v1039, %v1062
        %vm1065 = vcmask 0
        %1066 = vst.msk [vmem:[%s371] sm:$0x1] %vm1065, %v1064
        %v1067 = vld [vmem:[%s374] sm:$0x1]
        %v1068 = vmul.f32 %v815, %v430
        %v1069 = vmul.f32 %v816, %v431
        %v1070 = vmul.f32 %v817, %v432
        %v1071 = vmul.f32 %v818, %v433
        %v1072 = vmul.f32 %v819, %v434
        %v1073 = vsel %vm1045, %v1068, 0.0
        %v1074 = vsel %vm1045, %v1069, 0.0
        %v1075 = vadd.f32 %v1073, %v1074
        %v1076 = vsel %vm1045, %v1070, 0.0
        %v1077 = vadd.f32 %v1075, %v1076
        %v1078 = vsel %vm1045, %v1071, 0.0
        %v1079 = vadd.f32 %v1077, %v1078
        %v1080 = vsel %vm1053, %v1072, 0.0
        %v1081 = vadd.f32 %v1079, %v1080
        %1082 = vadd.xlane.f32.xlu0 %v1081
        %v1083 = vpop.xlane.xlu0 %1082
        %v1085 = vlaneseq
        %v1086 = vshrl.u32 %v1085, 7
        %v1087 = vsub.s32 1, %v1086
        %v1088 = vrot.slane %v1083, %v1087
        %v1090 = vadd.f32 %v1067, %v1088
        %1091 = vst.msk [vmem:[%s374] sm:$0x1] %vm1065, %v1090
        %v1092 = vld [vmem:[%s377] sm:$0x1]
        %v1093 = vsel %vm1045, %v430, 0.0
        %v1094 = vsel %vm1045, %v431, 0.0
        %v1095 = vadd.f32 %v1093, %v1094
        %v1096 = vsel %vm1045, %v432, 0.0
        %v1097 = vadd.f32 %v1095, %v1096
        %v1098 = vsel %vm1045, %v433, 0.0
        %v1099 = vadd.f32 %v1097, %v1098
        %v1100 = vsel %vm1053, %v434, 0.0
        %v1101 = vadd.f32 %v1099, %v1100
        %1102 = vadd.xlane.f32.xlu0 %v1101
        %v1103 = vpop.xlane.xlu0 %1102
        %v1105 = vlaneseq
        %v1106 = vshrl.u32 %v1105, 7
        %v1107 = vsub.s32 1, %v1106
        %v1108 = vrot.slane %v1103, %v1107
        %v1110 = vadd.f32 %v1092, %v1108
        %1111 = vst.msk [vmem:[%s377] sm:$0x1] %vm1065, %v1110
        %s1112 = sand.u32 %s127, 1
        %s1113 = scalar_lea.sflag [#allocation3], %s1112
        %s1114 = sand.u32 %s127, 1
        %s1115 = smul.addr %s1114, 10
        %s1116 = scalar_lea.vmem [#allocation2], %s1115
        %p1117 = scmp.lt.s32.totalorder %s25, 1
        %s1118 = scalar_select %p1117, %s25, 1
        %s1119 = scalar_lea.vmem %s4, %s1118
        %p1120 = scmp.lt.s32.totalorder %s25, 1
        %s1121 = scalar_select %p1120, %s25, 1
        %s1122 = scalar_lea.vmem %s5, %s1121
        %p1123 = scmp.lt.s32.totalorder %s25, 1
        %s1124 = scalar_select %p1123, %s25, 1
        %s1125 = scalar_lea.vmem %s6, %s1124
        // Predicated region
        $region37: #{tpu_custom_call.1} parent=31 // pred_check
          %p1126 = pneg %p137
        $region38: #{tpu_custom_call.1} parent=31 // pred_check_branch
          %1128 = sbr.rel (%p1126) target = $region40
        $region39: #{tpu_custom_call.1} parent=31 // pred_region
          %s1129 = smul.u32 5, %s26
          %s1131 = ssub.s32 160, 160
          %1132 = vsyncadd %s1113, %s1131
          %s1133 = smul.addr %s25, 5
          %s1134 = sadd.s32 %s1129, %s1133
          %s1135 = smul.addr %s1134, 32
          %s1136 = scalar_lea.hbm %s3, %s1135
          %s1138 = sshll.u32 %s1116, 4
          %s1139 = int_to_ptr.vmem [resolvable:$true] %s1138
          %1141 = dma.vmem_to_hbm [thread:$0]  %s1139, 160, %s1136, %s1113
        $region40: #{tpu_custom_call.1} parent=31 // pred_fallthru
          _
        // Predicated region
        $region41: #{tpu_custom_call.1} parent=31 // pred_check
          %p1142 = pneg %p163
        $region42: #{tpu_custom_call.1} parent=31 // pred_check_branch
          %1144 = sbr.rel (%p1142) target = $region44
        $region43: #{tpu_custom_call.1} parent=31 // pred_region
          _
        $region44: #{tpu_custom_call.1} parent=31 // pred_fallthru
          _
        // Predicated region
        $region45: #{tpu_custom_call.1} parent=31 // pred_check
          %p1145 = pneg %p189
        $region46: #{tpu_custom_call.1} parent=31 // pred_check_branch
          %1147 = sbr.rel (%p1145) target = $region48
        $region47: #{tpu_custom_call.1} parent=31 // pred_region
          _
        $region48: #{tpu_custom_call.1} parent=31 // pred_fallthru
          _
        // Predicated region
        $region49: #{tpu_custom_call.1} parent=31 // pred_check
          %p1148 = pneg %p215
        $region50: #{tpu_custom_call.1} parent=31 // pred_check_branch
          %1150 = sbr.rel (%p1148) target = $region52
        $region51: #{tpu_custom_call.1} parent=31 // pred_region
          _
        $region52: #{tpu_custom_call.1} parent=31 // pred_fallthru
          _
      $region32: #{tpu_custom_call.1} parent=5 // pred_fallthru
        _
      %p1151 = scmp.le.s32.totalorder 2, %s16
      // Predicated region
      $region53: #{tpu_custom_call.1} parent=5 // pred_check
        %p1152 = pneg %p1151
      $region54: #{tpu_custom_call.1} parent=5 // pred_check_branch
        %1154 = sbr.rel (%p1152) target = $region56
      $region55: #{tpu_custom_call.1} parent=5 // pred_region
        %s1155 = ssub.s32 %s16, 2
        // Predicated region
        $region57: #{tpu_custom_call.1} parent=55 // pred_check
          %p1156 = pneg %p143
        $region58: #{tpu_custom_call.1} parent=55 // pred_check_branch
          %1158 = sbr.rel (%p1156) target = $region60
        $region59: #{tpu_custom_call.1} parent=55 // pred_region
          %s1159 = sand.u32 %s128, 1
          %s1160 = scalar_lea.sflag [#allocation3], %s1159
          %s1161 = sand.u32 %s128, 1
          %s1162 = smul.addr %s1161, 10
          %s1163 = scalar_lea.vmem [#allocation2], %s1162
          %1164 = dma.done %s1160, 160
        $region60: #{tpu_custom_call.1} parent=55 // pred_fallthru
          _
        // Predicated region
        $region61: #{tpu_custom_call.1} parent=55 // pred_check
          %p1165 = pneg %p169
        $region62: #{tpu_custom_call.1} parent=55 // pred_check_branch
          %1167 = sbr.rel (%p1165) target = $region64
        $region63: #{tpu_custom_call.1} parent=55 // pred_region
          %p1168 = scmp.lt.s32.totalorder %s27, 1
          %s1169 = scalar_select %p1168, %s27, 1
          %s1170 = scalar_lea.vmem %s4, %s1169
        $region64: #{tpu_custom_call.1} parent=55 // pred_fallthru
          _
        // Predicated region
        $region65: #{tpu_custom_call.1} parent=55 // pred_check
          %p1171 = pneg %p195
        $region66: #{tpu_custom_call.1} parent=55 // pred_check_branch
          %1173 = sbr.rel (%p1171) target = $region68
        $region67: #{tpu_custom_call.1} parent=55 // pred_region
          %p1174 = scmp.lt.s32.totalorder %s27, 1
          %s1175 = scalar_select %p1174, %s27, 1
          %s1176 = scalar_lea.vmem %s5, %s1175
        $region68: #{tpu_custom_call.1} parent=55 // pred_fallthru
          _
        // Predicated region
        $region69: #{tpu_custom_call.1} parent=55 // pred_check
          %p1177 = pneg %p221
        $region70: #{tpu_custom_call.1} parent=55 // pred_check_branch
          %1179 = sbr.rel (%p1177) target = $region72
        $region71: #{tpu_custom_call.1} parent=55 // pred_region
          %p1180 = scmp.lt.s32.totalorder %s27, 1
          %s1181 = scalar_select %p1180, %s27, 1
          %s1182 = scalar_lea.vmem %s6, %s1181
        $region72: #{tpu_custom_call.1} parent=55 // pred_fallthru
          _
      $region56: #{tpu_custom_call.1} parent=5 // pred_fallthru
        _
    $region6: #{tpu_custom_call.1} parent=1 // loop_footer
      %s20 = sadd.s32 1, %s16
    $region7: #{tpu_custom_call.1} parent=1 // loop_footer_branch
      %15 = sbr.rel target = $region3
    $region8: #{tpu_custom_call.1} parent=1 // loop_exit
      _
    %1183 = vsyncpa [#allocation3], 1
    %s1184 = scalar_lea.sflag [#allocation3], 1
    %1185 = vsyncpa %s1184, 1

</llo_original>
